<compile_context>
chip_gen: v6e
topology: v6e:2x2x1
jax: 0.10.0
libtpu: 0.0.40
codegen_flags: <defaults>
</compile_context>

<pallas_src>
import functools
import math

import jax
import jax.numpy as jnp
from jax import lax
from jax.experimental import pallas as pl
from jax.experimental.pallas import tpu as pltpu


def _conv3x3_replicate_relu_kernel(x_ref, w_ref, o_ref, *, w):
    """One grid step: im2col 3x3 conv with replication padding + ReLU.

    x_ref: (tb, C_in, L)     activations, L = H*W flattened (lane axis)
    w_ref: (C_out, 9*C_in)   im2col weights, k = kw*3*C_in + kh*C_in + ci
    o_ref: (tb, C_out, L)    output block
    """
    tb, c_in, L = x_ref.shape
    c_out = o_ref.shape[1]
    k = 9 * c_in

    x = x_ref[...]                                     # (tb, C_in, L)

    # Column-edge masks (built in-kernel; no extra input / DMA needed).
    colv = lax.broadcasted_iota(jnp.int32, (1, 1, L), 2) % w
    lft = colv == 0                # w' == 0
    rgt = colv == (w - 1)          # w' == W-1

    # Vertical (row) shifts with replication: pure lane-axis concatenation,
    # the replicated edge row is spliced in directly (no mask needed).
    def up(y):      # y[.., clamp(h-1, 0), :]
        if L == w:                 # H == 1: row above is the row itself
            return y
        return jnp.concatenate([y[:, :, :w], y[:, :, :L - w]], axis=2)

    def down(y):    # y[.., clamp(h+1, H-1), :]
        if L == w:
            return y
        return jnp.concatenate([y[:, :, w:], y[:, :, L - w:]], axis=2)

    # Horizontal (column) shifts: shifted copy + edge fix-up select.
    def left(y):    # y[.., :, clamp(w'-1, 0)]
        if w == 1:
            return y
        s = jnp.concatenate([y[:, :, :1], y[:, :, :L - 1]], axis=2)
        return jnp.where(lft, y, s)

    def right(y):   # y[.., :, clamp(w'+1, W-1)]
        if w == 1:
            return y
        s = jnp.concatenate([y[:, :, 1:], y[:, :, L - 1:]], axis=2)
        return jnp.where(rgt, y, s)

    # im2col: two full-width concats build K = 9*C_in rows per item,
    # ordered (kw, kh, ci) to match the weight layout built in the wrapper.
    rows = jnp.concatenate([up(x), x, down(x)], axis=1)              # (tb, 3*C_in, L)
    rhs = jnp.concatenate([left(rows), rows, right(rows)], axis=1)   # (tb, 9*C_in, L)

    # Single batched MXU contraction per grid step, f32 accumulation.
    w_b = jnp.broadcast_to(w_ref[...], (tb, c_out, k))
    acc = lax.dot_general(
        w_b, rhs,
        dimension_numbers=(((2,), (1,)), ((0,), (0,))),
        preferred_element_type=jnp.float32)                          # (tb, C_out, L)

    o_ref[...] = jnp.maximum(acc, 0.0).astype(o_ref.dtype)


def conv3x3_replicate_relu(x, weight, *, max_tb=32, target_block_bytes=4 << 20):
    """ReplicationPad2d(1) -> Conv2d(3x3, stride 1, bias=False) -> ReLU (NCHW)."""
    N, C_in, H, W = x.shape
    C_out, C_in_w, KH, KW = weight.shape
    assert (C_in_w, KH, KW) == (C_in, 3, 3), "expected OIHW 3x3 conv weights"

    # ---- Lane-density guard --------------------------------------------------
    # Pad W with edge values so H*W_pad is a multiple of 128 (unmasked vector
    # stores).  Replication semantics are preserved because the extra columns
    # replicate the last real column; extra outputs are sliced off at the end.
    step = 128 // math.gcd(H, 128)
    W_pad = -(-W // step) * step
    if W_pad != W and W_pad <= 2 * W:
        x = jnp.pad(x, ((0, 0), (0, 0), (0, 0), (0, W_pad - W)), mode="edge")
    else:
        W_pad = W          # still correct; stores are masked if H*W % 128 != 0
    L = H * W_pad

    # Free (metadata-only) reshape: spatial dims flattened onto the lane axis.
    x2 = x.reshape(N, C_in, L)

    # im2col weight layout, one lane-dense 2-D array:
    #   w2[o, kw*3*C_in + kh*C_in + ci] = weight[o, ci, kh, kw]
    w2 = jnp.transpose(weight, (0, 3, 2, 1)).reshape(C_out, 9 * C_in).astype(x.dtype)

    # ---- Block sizing (includes in-kernel temporaries, not just DMA blocks) --
    itemsize = jnp.dtype(x.dtype).itemsize
    per_item = L * (
        2 * (C_in + C_out) * itemsize     # double-buffered input/output DMA blocks
        + 24 * C_in * itemsize            # rows + im2col rhs temporaries (~2x rhs)
        + 2 * C_out * 4)                  # f32 accumulator + ReLU result
    tb = int(max(1, min(N, max_tb, target_block_bytes // max(per_item, 1))))
    if N >= 2:
        # keep >= 2 grid steps so ("parallel",) can shard across both v7x cores
        tb = min(tb, -(-N // 2))
    # Pad the batch (instead of degrading tb -> 1) so awkward N keeps big blocks.
    N_pad = -(-N // tb) * tb
    if N_pad != N:
        x2 = jnp.pad(x2, ((0, N_pad - N), (0, 0), (0, 0)))
    grid = (N_pad // tb,)

    est_vmem = tb * per_item + (8 * 128 * 4) * 2 + (1 << 20)  # + weight tile + slack
    kernel = functools.partial(_conv3x3_replicate_relu_kernel, w=W_pad)

    out = pl.pallas_call(
        kernel,
        out_shape=jax.ShapeDtypeStruct((N_pad, C_out, L), x.dtype),
        grid=grid,
        in_specs=[
            pl.BlockSpec((tb, C_in, L), lambda i: (i, 0, 0)),
            pl.BlockSpec((C_out, 9 * C_in), lambda i: (0, 0)),
        ],
        out_specs=pl.BlockSpec((tb, C_out, L), lambda i: (i, 0, 0)),
        compiler_params=pltpu.CompilerParams(
            dimension_semantics=("parallel",),
            vmem_limit_bytes=int(min(max(32 << 20, 2 * est_vmem), 48 << 20)),
        ),
    )(x2, w2)

    out = out.reshape(N_pad, C_out, H, W_pad)
    if N_pad != N or W_pad != W:
        out = out[:N, :, :, :W]
    return out


if __name__ == "__main__":
    key = jax.random.PRNGKey(0)
    kx, kw = jax.random.split(key)
    N, C_in, C_out, H, W = 2, 4, 4, 16, 16
    x = jax.random.normal(kx, (N, C_in, H, W), dtype=jnp.float32)
    weight = 0.1 * jax.random.normal(kw, (C_out, C_in, 3, 3), dtype=jnp.float32)

    y = conv3x3_replicate_relu(x, weight)
    y = jax.block_until_ready(y)

    # Pure-JAX reference: ReplicationPad2d(1) -> Conv2d(3, bias=False) -> ReLU.
    xp = jnp.pad(x, ((0, 0), (0, 0), (1, 1), (1, 1)), mode="edge")
    ref = lax.conv_general_dilated(
        xp, weight, window_strides=(1, 1), padding="VALID",
        dimension_numbers=("NCHW", "OIHW", "NCHW"))
    ref = jnp.maximum(ref, 0.0)

    assert y.shape == ref.shape == (N, C_out, H, W)
    max_err = float(jnp.max(jnp.abs(y - ref)))
    assert jnp.allclose(y, ref, atol=1e-2, rtol=1e-2), f"mismatch, max|err|={max_err}"
    print("KERNEL_OK")
</pallas_src>

<mosaic_0001>
module attributes {stable_mosaic.version = 11 : i64} {
  func.func @_conv3x3_replicate_relu_kernel(%arg0: i32, %arg1: memref<1x4x256xf32, #tpu.memory_space<vmem>>, %arg2: memref<4x36xf32, #tpu.memory_space<vmem>>, %arg3: memref<1x4x256xf32, #tpu.memory_space<vmem>>) attributes {dimension_semantics = [#tpu.dimension_semantics<parallel>], iteration_bounds = array<i64: 2>, scalar_prefetch = 0 : i64, scratch_operands = 0 : i64, tpu.core_type = #tpu.core_type<tc>, window_params = [{transform_indices = @transform_0, window_bounds = array<i64: 1, 4, 256>}, {pipeline_mode = #tpu.pipeline_mode<synchronous>, transform_indices = @transform_1, window_bounds = array<i64: 4, 36>}, {transform_indices = @transform_2, window_bounds = array<i64: 1, 4, 256>}]} {
    %c0 = arith.constant 0 : index
    %c0_0 = arith.constant 0 : index
    %c0_1 = arith.constant 0 : index
    %0 = vector.load %arg1[%c0, %c0_0, %c0_1] : memref<1x4x256xf32, #tpu.memory_space<vmem>>, vector<1x4x256xf32>
    %1 = tpu.iota {dimensions = array<i32: 2>} : vector<1x1x256xi32>
    %c16_i32 = arith.constant 16 : i32
    %c0_i32 = arith.constant 0 : i32
    %2 = arith.cmpi eq, %c16_i32, %c0_i32 : i32
    %c1_i32 = arith.constant 1 : i32
    %3 = arith.select %2, %c1_i32, %c16_i32 : i32
    %4 = vector.broadcast %3 : i32 to vector<1x1x256xi32>
    %5 = arith.remsi %1, %4 : vector<1x1x256xi32>
    %c0_i32_2 = arith.constant 0 : i32
    %6 = vector.broadcast %c0_i32_2 : i32 to vector<1x1x256xi32>
    %7 = arith.cmpi ne, %5, %6 : vector<1x1x256xi32>
    %c0_i32_3 = arith.constant 0 : i32
    %8 = vector.broadcast %c0_i32_3 : i32 to vector<1x1x256xi32>
    %9 = arith.cmpi slt, %5, %8 : vector<1x1x256xi32>
    %c0_i32_4 = arith.constant 0 : i32
    %10 = arith.cmpi slt, %3, %c0_i32_4 : i32
    %11 = vector.broadcast %10 : i1 to vector<1x1x256xi1>
    %12 = vector.broadcast %11 : vector<1x1x256xi1> to vector<1x1x256xi1>
    %13 = arith.xori %9, %12 : vector<1x1x256xi1>
    %14 = arith.andi %13, %7 : vector<1x1x256xi1>
    %15 = vector.broadcast %3 : i32 to vector<1x1x256xi32>
    %16 = arith.addi %5, %15 : vector<1x1x256xi32>
    %17 = arith.select %14, %16, %5 : vector<1x1x256xi1>, vector<1x1x256xi32>
    %c0_i32_5 = arith.constant 0 : i32
    %18 = vector.broadcast %c0_i32_5 : i32 to vector<1x1x256xi32>
    %19 = arith.cmpi eq, %17, %18 : vector<1x1x256xi32>
    %c15_i32 = arith.constant 15 : i32
    %20 = vector.broadcast %c15_i32 : i32 to vector<1x1x256xi32>
    %21 = arith.cmpi eq, %17, %20 : vector<1x1x256xi32>
    %22 = vector.extract_strided_slice %0 {offsets = [0, 0, 0], sizes = [1, 4, 16], strides = [1, 1, 1]} : vector<1x4x256xf32> to vector<1x4x16xf32>
    %23 = vector.extract_strided_slice %0 {offsets = [0, 0, 0], sizes = [1, 4, 240], strides = [1, 1, 1]} : vector<1x4x256xf32> to vector<1x4x240xf32>
    %24 = tpu.concatenate %22, %23 in 2 : vector<1x4x16xf32>, vector<1x4x240xf32> -> vector<1x4x256xf32>
    %25 = vector.extract_strided_slice %0 {offsets = [0, 0, 16], sizes = [1, 4, 240], strides = [1, 1, 1]} : vector<1x4x256xf32> to vector<1x4x240xf32>
    %26 = vector.extract_strided_slice %0 {offsets = [0, 0, 240], sizes = [1, 4, 16], strides = [1, 1, 1]} : vector<1x4x256xf32> to vector<1x4x16xf32>
    %27 = tpu.concatenate %25, %26 in 2 : vector<1x4x240xf32>, vector<1x4x16xf32> -> vector<1x4x256xf32>
    %28 = tpu.concatenate %24, %0, %27 in 1 : vector<1x4x256xf32>, vector<1x4x256xf32>, vector<1x4x256xf32> -> vector<1x12x256xf32>
    %29 = vector.extract_strided_slice %28 {offsets = [0, 0, 0], sizes = [1, 12, 1], strides = [1, 1, 1]} : vector<1x12x256xf32> to vector<1x12x1xf32>
    %30 = vector.extract_strided_slice %28 {offsets = [0, 0, 0], sizes = [1, 12, 255], strides = [1, 1, 1]} : vector<1x12x256xf32> to vector<1x12x255xf32>
    %31 = tpu.concatenate %29, %30 in 2 : vector<1x12x1xf32>, vector<1x12x255xf32> -> vector<1x12x256xf32>
    %32 = vector.shape_cast %19 : vector<1x1x256xi1> to vector<1x1x256xi1>
    %33 = vector.broadcast %32 : vector<1x1x256xi1> to vector<1x12x256xi1>
    %34 = arith.select %33, %28, %31 : vector<1x12x256xi1>, vector<1x12x256xf32>
    %35 = vector.extract_strided_slice %28 {offsets = [0, 0, 1], sizes = [1, 12, 255], strides = [1, 1, 1]} : vector<1x12x256xf32> to vector<1x12x255xf32>
    %36 = vector.extract_strided_slice %28 {offsets = [0, 0, 255], sizes = [1, 12, 1], strides = [1, 1, 1]} : vector<1x12x256xf32> to vector<1x12x1xf32>
    %37 = tpu.concatenate %35, %36 in 2 : vector<1x12x255xf32>, vector<1x12x1xf32> -> vector<1x12x256xf32>
    %38 = vector.shape_cast %21 : vector<1x1x256xi1> to vector<1x1x256xi1>
    %39 = vector.broadcast %38 : vector<1x1x256xi1> to vector<1x12x256xi1>
    %40 = arith.select %39, %28, %37 : vector<1x12x256xi1>, vector<1x12x256xf32>
    %41 = tpu.concatenate %34, %28, %40 in 1 : vector<1x12x256xf32>, vector<1x12x256xf32>, vector<1x12x256xf32> -> vector<1x36x256xf32>
    %c0_6 = arith.constant 0 : index
    %c0_7 = arith.constant 0 : index
    %42 = vector.load %arg2[%c0_6, %c0_7] : memref<4x36xf32, #tpu.memory_space<vmem>>, vector<4x36xf32>
    %43 = vector.shape_cast %42 : vector<4x36xf32> to vector<1x4x36xf32>
    %cst = arith.constant dense<0.000000e+00> : vector<1x4x256xf32>
    %44 = tpu.matmul %43, %41, %cst {dimension_numbers = #tpu.dot_dimension_numbers<[2], [1], [1], [2], [0, 0, 0, 1, 1, 2], [0], [0]>} : vector<1x4x36xf32>, vector<1x36x256xf32>, vector<1x4x256xf32> -> vector<1x4x256xf32>
    %cst_8 = arith.constant 0.000000e+00 : f32
    %45 = vector.broadcast %cst_8 : f32 to vector<1x4x256xf32>
    %46 = arith.maximumf %44, %45 : vector<1x4x256xf32>
    %c0_9 = arith.constant 0 : index
    %c0_10 = arith.constant 0 : index
    %c0_11 = arith.constant 0 : index
    %47 = vector.load %arg3[%c0_9, %c0_10, %c0_11] : memref<1x4x256xf32, #tpu.memory_space<vmem>>, vector<1x4x256xf32>
    tpu.vector_store %arg3[%c0_9, %c0_10, %c0_11], %46 {strides = array<i32>} : memref<1x4x256xf32, #tpu.memory_space<vmem>>, vector<1x4x256xf32>,
    return
  }
  func.func @transform_0(%arg0: i32) -> (i32, i32, i32) {
    %c0_i32 = arith.constant 0 : i32
    %c0_i32_0 = arith.constant 0 : i32
    %c0_i32_1 = arith.constant 0 : i32
    return %arg0, %c0_i32, %c0_i32_0 : i32, i32, i32
  }
  func.func @transform_1(%arg0: i32) -> (i32, i32) {
    %c0_i32 = arith.constant 0 : i32
    %c0_i32_0 = arith.constant 0 : i32
    %c0_i32_1 = arith.constant 0 : i32
    return %c0_i32, %c0_i32_0 : i32, i32
  }
  func.func @transform_2(%arg0: i32) -> (i32, i32, i32) {
    %c0_i32 = arith.constant 0 : i32
    %c0_i32_0 = arith.constant 0 : i32
    %c0_i32_1 = arith.constant 0 : i32
    return %arg0, %c0_i32, %c0_i32_0 : i32, i32, i32
  }
}

</mosaic_0001>

<llo_original>
// kernel: tpu_custom_call.1
$region0: #{tpu_custom_call.1}
  #allocation0 [shape = 'u32[]', space=smem, size = 0x4, offset = 0x4, fixed_abs, tag = 'smem constant byte address 0x4 - core index']
  #allocation1 [shape = 'u32[144,128]{1,0:T(1,128)}', space=vmem, size = 0x12000, scoped, tag = 'internal scratch']
  %s0 = inlined_call_operand.hbm [shape: f32[2,4,256], index: 0, kind: input, shape index: {}]
  %s1 = inlined_call_operand.hbm [shape: f32[4,36], index: 1, kind: input, shape index: {}]
  %s2 = inlined_call_operand.hbm [shape: f32[2,4,256], index: 2, kind: output, shape index: {}]
  %s3 = sld [smem:[#allocation0]]
  $region49: #{tpu_custom_call.1} parent=0
    _
  %s5 = ssub.s32 1, %s3
  %s6 = scalar_select 0, %s5, %s3
  $region1: #{tpu_custom_call.1} parent=0
    #allocation2 [shape = 'u8[8192]{0}', space=vmem, size = 0x2000, scoped, tag = 'input window, operand 0']
    #allocation3 [shape = 's32[2]{0}', space=sflag, size = 0x8, scoped, tag = 'scoped memory for tpu_custom_call.1']
    #allocation4 [shape = 's32[2]{0}', space=sflag, size = 0x8, scoped, tag = 'scoped memory for tpu_custom_call.1']
    #allocation5 [shape = 'u8[2048]{0}', space=vmem, size = 0x800, scoped, tag = 'input window, operand 1, single buffered']
    #allocation6 [shape = 's32[1]{0}', space=sflag, size = 0x4, scoped, tag = 'scoped memory for tpu_custom_call.1']
    #allocation7 [shape = 'u8[8192]{0}', space=vmem, size = 0x2000, scoped, tag = 'output window, operand 0']
    %7 = vsyncpa [#allocation3], 0
    %s8 = scalar_lea.sflag [#allocation3], 1
    %9 = vsyncpa %s8, 0
    %10 = vsyncpa [#allocation6], 0
    %11 = vsyncpa [#allocation4], 0
    %s12 = scalar_lea.sflag [#allocation4], 1
    %13 = vsyncpa %s12, 0
    loop: start=0, step=1, limit=4
    $region2: #{tpu_custom_call.1} parent=1 // loop_pre_header
      _
    $region3: #{tpu_custom_call.1} parent=1 // loop_header
      %s15 = sphi 0, %s19
      %p16 = scmp.ge.s32.totalorder %s15, 4
      %s25 = sphi 0, %s27
      %s28 = sphi 0, %s25
      %s29 = sphi 0, %s28
      %s45 = sphi 0, %s29
      %s49 = sphi 0, %s49
      %s51 = sphi 0, %s49
      %s52 = sphi 0, %s51
      %s66 = sphi 0, %s52
      %s72 = sphi 0, %s74
      %s75 = sphi 0, %s72
      %s76 = sphi 0, %s75
      %s92 = sphi 0, %s76
    $region4: #{tpu_custom_call.1} parent=1 // loop_header_branch
      %18 = sbr.rel (%p16) target = $region8
    $region5: #{tpu_custom_call.1} parent=1 // loop_body
      %s20 = ssub.s32 %s15, 1
      %s21 = ssub.s32 %s15, 2
      %s22 = sadd.s32 %s15, 1
      %s23 = ssub.s32 %s15, %s22
      %p24 = scmp.eq.s32.totalorder %s23, 0
      %s26 = sadd.s32 %s25, 1
      %s27 = scalar_select %p24, %s25, %s26
      %p30 = pneg %p24
      %p31 = scmp.eq.s32.totalorder %s15, 1
      %p32 = por %p30, %p31
      %p33 = scmp.ne.s32.totalorder %s25, %s28
      %p34 = scmp.eq.s32.totalorder %s15, 0
      %p35 = por %p33, %p34
      %p36 = scmp.ne.s32.totalorder %s25, %s28
      %p37 = scmp.eq.s32.totalorder %s20, 1
      %p38 = por %p36, %p37
      %p39 = scmp.ne.s32.totalorder %s28, %s29
      %p40 = scmp.eq.s32.totalorder %s20, 0
      %p41 = por %p39, %p40
      %p42 = scmp.ne.s32.totalorder %s28, %s29
      %p43 = scmp.eq.s32.totalorder %s21, 1
      %p44 = por %p42, %p43
      %p46 = scmp.ne.s32.totalorder %s29, %s45
      %p47 = scmp.eq.s32.totalorder %s21, 0
      %p48 = por %p46, %p47
      %s50 = sadd.s32 %s49, 1
      %p53 = scmp.eq.s32.totalorder %s15, 1
      %p54 = scmp.ne.s32.totalorder %s49, %s51
      %p55 = scmp.eq.s32.totalorder %s15, 0
      %p56 = por %p54, %p55
      %p57 = scmp.ne.s32.totalorder %s49, %s51
      %p58 = scmp.eq.s32.totalorder %s20, 1
      %p59 = por %p57, %p58
      %p60 = scmp.ne.s32.totalorder %s51, %s52
      %p61 = scmp.eq.s32.totalorder %s20, 0
      %p62 = por %p60, %p61
      %p63 = scmp.ne.s32.totalorder %s51, %s52
      %p64 = scmp.eq.s32.totalorder %s21, 1
      %p65 = por %p63, %p64
      %p67 = scmp.ne.s32.totalorder %s52, %s66
      %p68 = scmp.eq.s32.totalorder %s21, 0
      %p69 = por %p67, %p68
      %s70 = ssub.s32 %s15, %s22
      %p71 = scmp.eq.s32.totalorder %s70, 0
      %s73 = sadd.s32 %s72, 1
      %s74 = scalar_select %p71, %s72, %s73
      %p77 = pneg %p71
      %p78 = scmp.eq.s32.totalorder %s15, 1
      %p79 = por %p77, %p78
      %p80 = scmp.ne.s32.totalorder %s72, %s75
      %p81 = scmp.eq.s32.totalorder %s15, 0
      %p82 = por %p80, %p81
      %p83 = scmp.ne.s32.totalorder %s72, %s75
      %p84 = scmp.eq.s32.totalorder %s20, 1
      %p85 = por %p83, %p84
      %p86 = scmp.ne.s32.totalorder %s75, %s76
      %p87 = scmp.eq.s32.totalorder %s20, 0
      %p88 = por %p86, %p87
      %p89 = scmp.ne.s32.totalorder %s75, %s76
      %p90 = scmp.eq.s32.totalorder %s21, 1
      %p91 = por %p89, %p90
      %p93 = scmp.ne.s32.totalorder %s76, %s92
      %p94 = scmp.eq.s32.totalorder %s21, 0
      %p95 = por %p93, %p94
      %p96 = scmp.le.s32.totalorder 1, %s15
      %p97 = scmp.lt.s32.totalorder %s15, 3
      %p98 = pnand %p96, %p97
      %p99 = pneg %p98
      // Predicated region
      $region9: #{tpu_custom_call.1} parent=5 // pred_check
        _
      $region10: #{tpu_custom_call.1} parent=5 // pred_check_branch
        %101 = sbr.rel (%p98) target = $region12
      $region11: #{tpu_custom_call.1} parent=5 // pred_region
        %s102 = ssub.s32 %s15, 1
        // Predicated region
        $region13: #{tpu_custom_call.1} parent=11 // pred_check
          %p103 = pneg %p62
        $region14: #{tpu_custom_call.1} parent=11 // pred_check_branch
          %105 = sbr.rel (%p103) target = $region16
        $region15: #{tpu_custom_call.1} parent=11 // pred_region
          %s107 = ssub.s32 64, 64
          %108 = vsyncadd [#allocation6], %s107
          %s110 = sshll.u32 [#allocation5], 4
          %s111 = int_to_ptr.vmem [resolvable:$true] %s110
          %113 = dma.hbm_to_vmem [thread:$0]  %s1, 64, %s111, [#allocation6]
        $region16: #{tpu_custom_call.1} parent=11 // pred_fallthru
          _
      $region12: #{tpu_custom_call.1} parent=5 // pred_fallthru
        _
      %p114 = scmp.lt.s32.totalorder %s15, 2
      // Predicated region
      $region17: #{tpu_custom_call.1} parent=5 // pred_check
        %p115 = pneg %p114
      $region18: #{tpu_custom_call.1} parent=5 // pred_check_branch
        %117 = sbr.rel (%p115) target = $region20
      $region19: #{tpu_custom_call.1} parent=5 // pred_region
        // Predicated region
        $region21: #{tpu_custom_call.1} parent=19 // pred_check
          %p118 = pneg %p35
        $region22: #{tpu_custom_call.1} parent=19 // pred_check_branch
          %120 = sbr.rel (%p118) target = $region24
        $region23: #{tpu_custom_call.1} parent=19 // pred_region
          %s121 = sand.u32 %s25, 1
          %s122 = scalar_lea.sflag [#allocation3], %s121
          %s123 = sand.u32 %s25, 1
          %s124 = smul.addr %s123, 8
          %s125 = scalar_lea.vmem [#allocation2], %s124
          %s127 = ssub.s32 128, 128
          %128 = vsyncadd %s122, %s127
          %s129 = smul.addr %s15, 2
          %s130 = smul.addr %s129, 64
          %s131 = scalar_lea.hbm %s0, %s130
          %s133 = sshll.u32 %s125, 4
          %s134 = int_to_ptr.vmem [resolvable:$true] %s133
          %136 = dma.hbm_to_vmem [thread:$0]  %s131, 128, %s134, %s122
        $region24: #{tpu_custom_call.1} parent=19 // pred_fallthru
          _
      $region20: #{tpu_custom_call.1} parent=5 // pred_fallthru
        _
      %p137 = scmp.le.s32.totalorder 1, %s15
      %p138 = scmp.lt.s32.totalorder %s15, 3
      %p139 = pnand %p137, %p138
      %p140 = pneg %p139
      // Predicated region
      $region25: #{tpu_custom_call.1} parent=5 // pred_check
        _
      $region26: #{tpu_custom_call.1} parent=5 // pred_check_branch
        %142 = sbr.rel (%p139) target = $region28
      $region27: #{tpu_custom_call.1} parent=5 // pred_region
        %s143 = ssub.s32 %s15, 1
        %s144 = sand.u32 %s28, 1
        %s145 = scalar_lea.sflag [#allocation3], %s144
        %s146 = sand.u32 %s28, 1
        %s147 = smul.addr %s146, 8
        %s148 = scalar_lea.vmem [#allocation2], %s147
        // Predicated region
        $region29: #{tpu_custom_call.1} parent=27 // pred_check
          %p149 = pneg %p41
        $region30: #{tpu_custom_call.1} parent=27 // pred_check_branch
          %151 = sbr.rel (%p149) target = $region32
        $region31: #{tpu_custom_call.1} parent=27 // pred_region
          %152 = dma.done %s145, 128
        $region32: #{tpu_custom_call.1} parent=27 // pred_fallthru
          _
        // Predicated region
        $region33: #{tpu_custom_call.1} parent=27 // pred_check
          %p153 = pneg %p62
        $region34: #{tpu_custom_call.1} parent=27 // pred_check_branch
          %155 = sbr.rel (%p153) target = $region36
        $region35: #{tpu_custom_call.1} parent=27 // pred_region
          %156 = dma.done [#allocation6], 64
        $region36: #{tpu_custom_call.1} parent=27 // pred_fallthru
          _
        %s157 = sand.u32 %s28, 1
        %s158 = scalar_lea.sflag [#allocation3], %s157
        %s159 = sand.u32 %s28, 1
        %s160 = smul.addr %s159, 8
        %s161 = scalar_lea.vmem [#allocation2], %s160
        %p162 = pneg %p41
        %p163 = pneg %p38
        %p164 = pneg %p62
        %p165 = pneg %p59
        %p166 = pneg %p88
        %p167 = pneg %p85
        %s168 = sand.u32 %s75, 1
        %s169 = scalar_lea.sflag [#allocation4], %s168
        %s170 = sand.u32 %s75, 1
        %s171 = smul.addr %s170, 8
        %s172 = scalar_lea.vmem [#allocation7], %s171
        %v173 = vld [vmem:[%s148] sm:$0xff]
        %v174 = vlaneseq
        %v175 = vand.u32 %v174, 127
        %v176 = vadd.s32 %v175, 128
        %vm177 = vcmp.lt.s32.totalorder %v175, 0
        %v178 = vsub.s32 0, %v175
        %v179 = vsel %vm177, %v178, %v175
        %v180 = vshrl.u32 %v179, 4
        %v181 = vand.u32 %v179, 15
        %v182 = vsub.s32 0, %v181
        %v183 = vsel %vm177, %v182, %v181
        %vm184 = vcmp.lt.s32.totalorder %v176, 0
        %v185 = vsub.s32 0, %v176
        %v186 = vsel %vm184, %v185, %v176
        %v187 = vshrl.u32 %v186, 4
        %v188 = vand.u32 %v186, 15
        %v189 = vsub.s32 0, %v188
        %v190 = vsel %vm184, %v189, %v188
        %vm191 = vcmp.ne.s32.totalorder %v183, 0
        %vm192 = vcmp.ne.s32.totalorder %v190, 0
        %vm193 = vcmp.lt.s32.totalorder %v183, 0
        %vm194 = vcmp.lt.s32.totalorder %v190, 0
        %vm195 = vmand %vm193, %vm191
        %vm196 = vmand %vm194, %vm192
        %v197 = vadd.s32 %v183, 16
        %v198 = vadd.s32 %v190, 16
        %v199 = vsel %vm195, %v197, %v183
        %v200 = vsel %vm196, %v198, %v190
        %vm201 = vcmp.eq.s32.totalorder %v199, 0
        %vm202 = vcmp.eq.s32.totalorder %v200, 0
        %vm203 = vcmp.eq.s32.totalorder %v199, 15
        %vm204 = vcmp.eq.s32.totalorder %v200, 15
        %v206 = vcombine.high %v173, %v173
        %207 = vrot.lane.b32.xlu0 %v173, 16
        %v208 = vpop.permute.xlu0 %207
        %209 = vrot.lane.b32.xlu0 %v206, 16
        %v210 = vpop.permute.xlu0 %209
        %vm211 = vcmask 130048
        %v212 = vsel %vm211, %v208, %v210
        %v215 = vsel %vm211, %v173, %v208
        %216 = vrot.lane.b32.xlu0 %v173, 112
        %v217 = vpop.permute.xlu0 %216
        %218 = vrot.lane.b32.xlu0 %v206, 112
        %v219 = vpop.permute.xlu0 %218
        %vm220 = vcmask 916480
        %v221 = vsel %vm220, %v217, %v219
        %v225 = vsel %vm220, %v219, %v206
        %v226 = vcombine.low %v173, %v173
        %vm228 = vcmask 1043456
        %v229 = vsel %vm228, %v215, %v226
        %v230 = vsel %vm228, %v212, %v173
        %234 = vrot.lane.b32.xlu0 %v229, 1
        %v235 = vpop.permute.xlu0 %234
        %236 = vrot.lane.b32.xlu0 %v230, 1
        %v237 = vpop.permute.xlu0 %236
        %238 = vrot.lane.b32.xlu0 %v221, 1
        %v239 = vpop.permute.xlu0 %238
        %240 = vrot.lane.b32.xlu0 %v225, 1
        %v241 = vpop.permute.xlu0 %240
        %vm242 = vcmask 7168
        %v243 = vsel %vm242, %v235, %v237
        %v244 = vsel %vm242, %v239, %v241
        %v249 = vsel %vm242, %v229, %v235
        %v250 = vsel %vm242, %v221, %v239
        %v251 = vsel %vm201, 1, 0
        %v252 = vsel %vm202, 1, 0
        %vm253 = vcmp.eq.s32.totalorder %v251, 1
        %vm254 = vcmp.eq.s32.totalorder %v252, 1
        %v255 = vsel %vm253, %v229, %v249
        %v256 = vsel %vm254, %v230, %v243
        %v257 = vsel %vm253, %v221, %v250
        %v258 = vsel %vm254, %v225, %v244
        %259 = vrot.lane.b32.xlu0 %v229, 127
        %v260 = vpop.permute.xlu0 %259
        %261 = vrot.lane.b32.xlu0 %v230, 127
        %v262 = vpop.permute.xlu0 %261
        %263 = vrot.lane.b32.xlu0 %v221, 127
        %v264 = vpop.permute.xlu0 %263
        %265 = vrot.lane.b32.xlu0 %v225, 127
        %v266 = vpop.permute.xlu0 %265
        %vm267 = vcmask 1039360
        %v268 = vsel %vm267, %v260, %v262
        %v269 = vsel %vm267, %v264, %v266
        %v274 = vsel %vm267, %v262, %v230
        %v275 = vsel %vm267, %v266, %v225
        %v276 = vsel %vm203, 1, 0
        %v277 = vsel %vm204, 1, 0
        %vm278 = vcmp.eq.s32.totalorder %v276, 1
        %vm279 = vcmp.eq.s32.totalorder %v277, 1
        %v280 = vsel %vm278, %v229, %v268
        %v281 = vsel %vm279, %v230, %v274
        %v282 = vsel %vm278, %v221, %v269
        %v283 = vsel %vm279, %v225, %v275
        %v284 = vrot.slane %v229, 4
        %v285 = vrot.slane %v230, 4
        %v286 = vrot.slane %v221, 4
        %v287 = vsel %vm228, %v284, %v286
        %v288 = vrot.slane %v225, 4
        %v289 = vsel %vm228, %v285, %v288
        %v294 = vsel %vm228, %v257, %v284
        %v295 = vsel %vm228, %v258, %v285
        %v296 = vld [vmem:[#allocation5] sm:$0xf]
        %vm297 = vcmask 293888
        %v299 = vsel %vm297, %v296, 0
        %v302 = vsel %vm228, %v282, 0
        %v305 = vsel %vm228, %v283, 0
        %307 = vmatprep.subr.mxu0 0.0
        %308 = vmatpush1.msra.mxu0 0.0
        %309 = vmatprep.subr.mxu0 0.0
        %310 = vmatpush1.msra.mxu0 0.0
        %311 = vmatprep.subr.mxu0 0.0
        %312 = vmatpush1.msra.mxu0 0.0
        %313 = vmatprep.subr.mxu0 0.0
        %314 = vmatpush1.msra.mxu0 0.0
        %315 = vmatprep.subr.mxu0 0.0
        %316 = vmatpush1.msra.mxu0 0.0
        %317 = vmatprep.subr.mxu0 0.0
        %318 = vmatpush1.msra.mxu0 0.0
        %319 = vmatprep.subr.mxu0 0.0
        %320 = vmatpush1.msra.mxu0 0.0
        %321 = vmatprep.subr.mxu0 0.0
        %322 = vmatpush1.msra.mxu0 0.0
        %323 = vmatprep.subr.mxu0 0.0
        %324 = vmatpush1.msra.mxu0 0.0
        %325 = vmatprep.subr.mxu0 0.0
        %326 = vmatpush1.msra.mxu0 0.0
        %327 = vmatprep.subr.mxu0 0.0
        %328 = vmatpush1.msra.mxu0 0.0
        %329 = vmatprep.subr.mxu0 %v305
        %330 = vmatpush1.msra.mxu0 %v302
        %331 = vmatprep.subr.mxu0 %v281
        %332 = vmatpush1.msra.mxu0 %v280
        %333 = vmatprep.subr.mxu0 %v289
        %334 = vmatpush1.msra.mxu0 %v287
        %335 = vmatprep.subr.mxu0 %v295
        %336 = vmatpush1.msra.mxu0 %v294
        %337 = vmatprep.subr.mxu0 %v256
        %338 = vmatpush1.msra.mxu0 %v255
        %339 = vmatprep.subr.mxu0 0.0
        %340 = vmatpush2.msra.mxu0 0.0
        %341 = vmatprep.subr.mxu0 0.0
        %342 = vmatpush2.msra.mxu0 0.0
        %343 = vmatprep.subr.mxu0 0.0
        %344 = vmatpush2.msra.mxu0 0.0
        %345 = vmatprep.subr.mxu0 0.0
        %346 = vmatpush2.msra.mxu0 0.0
        %347 = vmatprep.subr.mxu0 0.0
        %348 = vmatpush2.msra.mxu0 0.0
        %349 = vmatprep.subr.mxu0 0.0
        %350 = vmatpush2.msra.mxu0 0.0
        %351 = vmatprep.subr.mxu0 0.0
        %352 = vmatpush2.msra.mxu0 0.0
        %353 = vmatprep.subr.mxu0 0.0
        %354 = vmatpush2.msra.mxu0 0.0
        %355 = vmatprep.subr.mxu0 0.0
        %356 = vmatpush2.msra.mxu0 0.0
        %357 = vmatprep.subr.mxu0 0.0
        %358 = vmatpush2.msra.mxu0 0.0
        %359 = vmatprep.subr.mxu0 0.0
        %360 = vmatpush2.msra.mxu0 0.0
        %361 = vmatprep.subr.mxu0 0.0
        %362 = vmatpush2.msra.mxu0 0.0
        %363 = vmatprep.subr.mxu0 0.0
        %364 = vmatpush2.msra.mxu0 0.0
        %365 = vmatprep.subr.mxu0 0.0
        %366 = vmatpush2.msra.mxu0 0.0
        %367 = vmatprep.subr.mxu0 0.0
        %368 = vmatpush2.msra.mxu0 0.0
        %369 = vmatprep.subr.mxu0 0.0
        %370 = vmatpush2.msra.mxu0 0.0
        %371 = vmatprep.mubr.f32.mxu0 0.0
        %372 = vmatmul.mubr.f32.gmra.mxu0 %v299
        %v373 = vpop.f32.mrf.mxu0
        %v374 = vadd.f32 0.0, %v373
        %v375 = vpop.f32.mrf.mxu0
        %v376 = vadd.f32 0.0, %v375
        %377 = vdwg.mxu0
        %v378 = vmax.f32 %v374, 0.0
        %v379 = vmax.f32 %v376, 0.0
        %v382 = vcombine.low %v378, %v379
        %384 = vst [vmem:[%s172] sm:$0xff] %v382
        %s385 = sand.u32 %s75, 1
        %s386 = scalar_lea.sflag [#allocation4], %s385
        %s387 = sand.u32 %s75, 1
        %s388 = smul.addr %s387, 8
        %s389 = scalar_lea.vmem [#allocation7], %s388
        // Predicated region
        $region37: #{tpu_custom_call.1} parent=27 // pred_check
          %p390 = pneg %p85
        $region38: #{tpu_custom_call.1} parent=27 // pred_check_branch
          %392 = sbr.rel (%p390) target = $region40
        $region39: #{tpu_custom_call.1} parent=27 // pred_region
          %s394 = ssub.s32 128, 128
          %395 = vsyncadd %s386, %s394
          %s396 = smul.addr %s20, 2
          %s397 = smul.addr %s396, 64
          %s398 = scalar_lea.hbm %s2, %s397
          %s400 = sshll.u32 %s389, 4
          %s401 = int_to_ptr.vmem [resolvable:$true] %s400
          %403 = dma.vmem_to_hbm [thread:$0]  %s401, 128, %s398, %s386
        $region40: #{tpu_custom_call.1} parent=27 // pred_fallthru
          _
      $region28: #{tpu_custom_call.1} parent=5 // pred_fallthru
        _
      %p404 = scmp.le.s32.totalorder 2, %s15
      // Predicated region
      $region41: #{tpu_custom_call.1} parent=5 // pred_check
        %p405 = pneg %p404
      $region42: #{tpu_custom_call.1} parent=5 // pred_check_branch
        %407 = sbr.rel (%p405) target = $region44
      $region43: #{tpu_custom_call.1} parent=5 // pred_region
        %s408 = ssub.s32 %s15, 2
        // Predicated region
        $region45: #{tpu_custom_call.1} parent=43 // pred_check
          %p409 = pneg %p91
        $region46: #{tpu_custom_call.1} parent=43 // pred_check_branch
          %411 = sbr.rel (%p409) target = $region48
        $region47: #{tpu_custom_call.1} parent=43 // pred_region
          %s412 = sand.u32 %s76, 1
          %s413 = scalar_lea.sflag [#allocation4], %s412
          %s414 = sand.u32 %s76, 1
          %s415 = smul.addr %s414, 8
          %s416 = scalar_lea.vmem [#allocation7], %s415
          %417 = dma.done %s413, 128
        $region48: #{tpu_custom_call.1} parent=43 // pred_fallthru
          _
      $region44: #{tpu_custom_call.1} parent=5 // pred_fallthru
        _
    $region6: #{tpu_custom_call.1} parent=1 // loop_footer
      %s19 = sadd.s32 1, %s15
    $region7: #{tpu_custom_call.1} parent=1 // loop_footer_branch
      %14 = sbr.rel target = $region3
    $region8: #{tpu_custom_call.1} parent=1 // loop_exit
      _
    %418 = vsyncpa [#allocation3], 1
    %s419 = scalar_lea.sflag [#allocation3], 1
    %420 = vsyncpa %s419, 1
    %421 = vsyncpa [#allocation6], 1
    %422 = vsyncpa [#allocation4], 1
    %s423 = scalar_lea.sflag [#allocation4], 1
    %424 = vsyncpa %s423, 1

</llo_original>
